<compile_context>
chip_gen: v7x
topology: tpu7x:2x2x1
jax: 0.10.0
libtpu: 0.0.40
codegen_flags: <defaults>
</compile_context>

<pallas_src>
import functools

import jax
import jax.numpy as jnp
from jax.experimental import pallas as pl
from jax.experimental.pallas import tpu as pltpu

LANE = 128      # TPU lane width (last dim must be lane-dense)
SUBLANE = 8     # f32 sublane count


def _round_up(a: int, b: int) -> int:
    return ((a + b - 1) // b) * b


def _cdiv(a: int, b: int) -> int:
    return -(-a // b)


def _tpu_config():
    """(cores for the parallel axis, max tile rows, vmem_limit_bytes) per generation."""
    kind = ""
    try:
        kind = jax.devices()[0].device_kind.lower()
    except Exception:
        pass
    is_v7 = ("7x" in kind) or ("v7" in kind)
    is_v6 = "v6" in kind
    multi_tc = is_v7 or ("v4" in kind) or ("v5p" in kind)
    ncores = 2 if multi_tc else 1
    if is_v7:
        # 64 MiB physical VMEM per TC: 8192-row f32 tiles = 4 MiB/buffer,
        # 2 inputs x 2 buffers = 16 MiB -> comfortably under a 40 MiB scoped limit.
        return ncores, 8192, 40 << 20
    if is_v6:
        # 128 MiB physical VMEM; raise the scoped limit past the 32 MiB default.
        return ncores, 8192, 64 << 20
    # v5e / v5p / v4 / unknown: 4096-row tiles (8 MiB double-buffered), limit
    # above v5e's 16 MiB default scoped VMEM but safe on every generation.
    return ncores, 4096, 32 << 20


def _sse_kernel(xr_ref, x_ref, acc_ref, *, tm, steps_per_core, valid_rows):
    """Stream sum((xr - x)^2) into a resident (8,128) f32 block per core."""
    c = pl.program_id(0)   # parallel axis (per-TensorCore on multi-TC chips)
    i = pl.program_id(1)   # arbitrary (streaming reduction) axis

    @pl.when(i == 0)
    def _init():
        acc_ref[...] = jnp.zeros_like(acc_ref)

    # Logical (unclamped) first row of this step's block.  Rows at or past
    # `valid_rows` (edge-block padding or fully clamped blocks) are masked out.
    start = (c * steps_per_core + i) * tm
    row_ids = start + jax.lax.broadcasted_iota(jnp.int32, (tm, LANE), 0)
    mask = row_ids < valid_rows

    # Cast to f32 *before* subtract/square so narrow input dtypes keep precision.
    diff = xr_ref[...].astype(jnp.float32) - x_ref[...].astype(jnp.float32)
    sq = jnp.where(mask, diff * diff, 0.0)

    # Per-step reduction is sublane-band vector adds only (pure VPU); the single
    # cross-lane reduce happens once, on the tiny partials, in the wrapper.
    acc_ref[...] += jnp.sum(sq.reshape(-1, SUBLANE, LANE), axis=0)


def custom_loss(x_recon, x, mu, logvar):
    """Pallas implementation of CustomLoss.forward. Returns a scalar float32."""
    assert x_recon.shape == x.shape, "x_recon and x must have the same shape"
    assert mu.shape == logvar.shape, "mu and logvar must have the same shape"

    x_recon = jnp.asarray(x_recon)
    x = jnp.asarray(x)
    mu = jnp.asarray(mu)
    logvar = jnp.asarray(logvar)

    ncores, tm_max, vmem_limit = _tpu_config()

    # ---- lane-dense view of the streaming tensors (no tile-granular padding) ----
    n = 1
    for d in x.shape:
        n *= d
    n = max(int(n), 1)
    rows = _cdiv(n, LANE)                    # valid rows
    pad = rows * LANE - n                    # < 128 elems; only when n % 128 != 0

    flat_r = jnp.ravel(x_recon)
    flat_x = jnp.ravel(x)
    if pad:
        # Rare case (numel not a multiple of 128); pads contribute 0 (diff = 0).
        flat_r = jnp.pad(flat_r, (0, pad))
        flat_x = jnp.pad(flat_x, (0, pad))
    xr2 = flat_r.reshape(rows, LANE)         # free bitcast for contiguous inputs
    x2 = flat_x.reshape(rows, LANE)

    # ---- grid: (cores, steps) with a masked ragged tail (no zero streaming) ----
    rows_per_core = _cdiv(rows, ncores)
    tm = min(tm_max, _round_up(rows_per_core, SUBLANE))
    total_blocks = _cdiv(rows, tm)
    steps_per_core = _cdiv(total_blocks, ncores)
    last_block = total_blocks - 1

    def stream_map(c, i):
        # Clamp so a core with no remaining work re-reads a valid block; the
        # in-kernel row mask zeroes its contribution.
        return (jnp.minimum(c * steps_per_core + i, last_block), 0)

    kernel = functools.partial(
        _sse_kernel, tm=tm, steps_per_core=steps_per_core, valid_rows=rows)

    itemsize = jnp.dtype(x.dtype).itemsize
    cost = pl.CostEstimate(
        flops=3 * n,                                   # sub, mul, add per element
        transcendentals=0,
        bytes_accessed=2 * n * itemsize + ncores * SUBLANE * LANE * 4)

    partials = pl.pallas_call(
        kernel,
        out_shape=jax.ShapeDtypeStruct((ncores * SUBLANE, LANE), jnp.float32),
        grid_spec=pltpu.PrefetchScalarGridSpec(
            num_scalar_prefetch=0,
            grid=(ncores, steps_per_core),
            in_specs=[
                pl.BlockSpec((tm, LANE), stream_map),
                pl.BlockSpec((tm, LANE), stream_map),
            ],
            out_specs=pl.BlockSpec((SUBLANE, LANE), lambda c, i: (c, 0)),
        ),
        compiler_params=pltpu.CompilerParams(
            dimension_semantics=("parallel", "arbitrary"),
            vmem_limit_bytes=vmem_limit,
        ),
        cost_estimate=cost,
    )(xr2, x2)

    loss_mse = jnp.sum(partials)

    # KLD over the (tiny, few-KB) latent statistics: plain JAX per perf review —
    # removes two kernel inputs, their pad copies, and the core-0 startup burst.
    mu32 = mu.astype(jnp.float32)
    lv32 = logvar.astype(jnp.float32)
    loss_kld = -0.5 * jnp.sum(1.0 + lv32 - mu32 * mu32 - jnp.exp(lv32))

    return loss_mse + loss_kld


if __name__ == "__main__":
    key = jax.random.PRNGKey(0)
    k1, k2, k3, k4 = jax.random.split(key, 4)

    # Typical VAE shapes: reconstruction matches the input image, mu/logvar
    # are the latent statistics.
    B, C, H, W = 2, 4, 16, 16     # image-like input (NCHW convention upstream)
    Z = 32                        # latent dimension

    x = jax.random.normal(k1, (B, C, H, W), dtype=jnp.float32)
    x_recon = jax.random.normal(k2, (B, C, H, W), dtype=jnp.float32)
    mu = jax.random.normal(k3, (B, Z), dtype=jnp.float32) * 0.5
    logvar = jax.random.normal(k4, (B, Z), dtype=jnp.float32) * 0.1

    loss = custom_loss(x_recon, x, mu, logvar)
    jax.block_until_ready(loss)

    # Reference check in plain JAX (same math as the PyTorch module).
    ref_mse = jnp.sum((x_recon - x) ** 2)
    ref_kld = -0.5 * jnp.sum(1.0 + logvar - mu ** 2 - jnp.exp(logvar))
    ref = ref_mse + ref_kld
    assert jnp.allclose(loss, ref, rtol=1e-5, atol=1e-4), (loss, ref)

    print("KERNEL_OK")
</pallas_src>

<mosaic_0001>
module attributes {stable_mosaic.version = 11 : i64} {
  func.func @_sse_kernel(%arg0: i32, %arg1: i32, %arg2: memref<16x128xf32, #tpu.memory_space<vmem>>, %arg3: memref<16x128xf32, #tpu.memory_space<vmem>>, %arg4: memref<8x128xf32, #tpu.memory_space<vmem>>) attributes {dimension_semantics = [#tpu.dimension_semantics<parallel>, #tpu.dimension_semantics<arbitrary>], iteration_bounds = array<i64: 1, 1>, scalar_prefetch = 0 : i64, scratch_operands = 0 : i64, tpu.core_type = #tpu.core_type<tc>, window_params = [{transform_indices = @transform_0, window_bounds = array<i64: 16, 128>}, {transform_indices = @transform_1, window_bounds = array<i64: 16, 128>}, {transform_indices = @transform_2, window_bounds = array<i64: 8, 128>}]} {
    %c0_i32 = arith.constant 0 : i32
    %0 = arith.cmpi eq, %arg1, %c0_i32 : i32
    %1 = arith.extui %0 : i1 to i32
    %c0_i32_0 = arith.constant 0 : i32
    %2 = arith.cmpi ne, %1, %c0_i32_0 : i32
    scf.if %2 {
      %cst_10 = arith.constant 0.000000e+00 : f32
      %22 = vector.broadcast %cst_10 : f32 to vector<8x128xf32>
      %c0_11 = arith.constant 0 : index
      %c0_12 = arith.constant 0 : index
      %23 = vector.load %arg4[%c0_11, %c0_12] : memref<8x128xf32, #tpu.memory_space<vmem>>, vector<8x128xf32>
      tpu.vector_store %arg4[%c0_11, %c0_12], %22 {strides = array<i32>} : memref<8x128xf32, #tpu.memory_space<vmem>>, vector<8x128xf32>,
    } else {
    }
    %c1_i32 = arith.constant 1 : i32
    %3 = arith.muli %arg0, %c1_i32 : i32
    %4 = arith.addi %3, %arg1 : i32
    %c16_i32 = arith.constant 16 : i32
    %5 = arith.muli %4, %c16_i32 : i32
    %6 = tpu.iota {dimensions = array<i32: 0>} : vector<16x128xi32>
    %7 = vector.broadcast %5 : i32 to vector<16x128xi32>
    %8 = arith.addi %7, %6 : vector<16x128xi32>
    %c16_i32_1 = arith.constant 16 : i32
    %9 = vector.broadcast %c16_i32_1 : i32 to vector<16x128xi32>
    %10 = arith.cmpi slt, %8, %9 : vector<16x128xi32>
    %c0 = arith.constant 0 : index
    %c0_2 = arith.constant 0 : index
    %11 = vector.load %arg2[%c0, %c0_2] : memref<16x128xf32, #tpu.memory_space<vmem>>, vector<16x128xf32>
    %c0_3 = arith.constant 0 : index
    %c0_4 = arith.constant 0 : index
    %12 = vector.load %arg3[%c0_3, %c0_4] : memref<16x128xf32, #tpu.memory_space<vmem>>, vector<16x128xf32>
    %13 = arith.subf %11, %12 : vector<16x128xf32>
    %14 = arith.mulf %13, %13 : vector<16x128xf32>
    %cst = arith.constant 0.000000e+00 : f32
    %15 = vector.broadcast %cst : f32 to vector<16x128xf32>
    %16 = arith.select %10, %14, %15 : vector<16x128xi1>, vector<16x128xf32>
    %c0_5 = arith.constant 0 : index
    %c0_6 = arith.constant 0 : index
    %17 = vector.load %arg4[%c0_5, %c0_6] : memref<8x128xf32, #tpu.memory_space<vmem>>, vector<8x128xf32>
    %18 = vector.shape_cast %16 : vector<16x128xf32> to vector<2x8x128xf32>
    %cst_7 = arith.constant dense<0.000000e+00> : vector<8x128xf32>
    %19 = vector.multi_reduction <add>, %18, %cst_7 [0] : vector<2x8x128xf32> to vector<8x128xf32>
    %20 = arith.addf %17, %19 : vector<8x128xf32>
    %c0_8 = arith.constant 0 : index
    %c0_9 = arith.constant 0 : index
    %21 = vector.load %arg4[%c0_8, %c0_9] : memref<8x128xf32, #tpu.memory_space<vmem>>, vector<8x128xf32>
    tpu.vector_store %arg4[%c0_8, %c0_9], %20 {strides = array<i32>} : memref<8x128xf32, #tpu.memory_space<vmem>>, vector<8x128xf32>,
    return
  }
  func.func @transform_0(%arg0: i32, %arg1: i32) -> (i32, i32) {
    %c1_i32 = arith.constant 1 : i32
    %0 = arith.muli %arg0, %c1_i32 : i32
    %1 = arith.addi %0, %arg1 : i32
    %c0_i32 = arith.constant 0 : i32
    %2 = arith.minsi %1, %c0_i32 : i32
    %c0_i32_0 = arith.constant 0 : i32
    %c0_i32_1 = arith.constant 0 : i32
    return %2, %c0_i32_0 : i32, i32
  }
  func.func @transform_1(%arg0: i32, %arg1: i32) -> (i32, i32) {
    %c1_i32 = arith.constant 1 : i32
    %0 = arith.muli %arg0, %c1_i32 : i32
    %1 = arith.addi %0, %arg1 : i32
    %c0_i32 = arith.constant 0 : i32
    %2 = arith.minsi %1, %c0_i32 : i32
    %c0_i32_0 = arith.constant 0 : i32
    %c0_i32_1 = arith.constant 0 : i32
    return %2, %c0_i32_0 : i32, i32
  }
  func.func @transform_2(%arg0: i32, %arg1: i32) -> (i32, i32) {
    %c0_i32 = arith.constant 0 : i32
    %c0_i32_0 = arith.constant 0 : i32
    return %arg0, %c0_i32 : i32, i32
  }
}

</mosaic_0001>

<llo_original>
// kernel: tpu_custom_call.1
$region0: #{tpu_custom_call.1}
  #allocation0 [shape = 'u32[]', space=smem, size = 0x4, offset = 0x4, fixed_abs, tag = 'smem constant byte address 0x4 - core index']
  #allocation1 [shape = 'u32[144,128]{1,0:T(1,128)}', space=vmem, size = 0x12000, scoped, tag = 'internal scratch']
  %s0 = inlined_call_operand.hbm [shape: f32[16,128], index: 0, kind: input, shape index: {}]
  %s1 = inlined_call_operand.hbm [shape: f32[16,128], index: 1, kind: input, shape index: {}]
  %s2 = inlined_call_operand.hbm [shape: f32[8,128], index: 2, kind: output, shape index: {}]
  %s3 = sld [smem:[#allocation0]]
  $region30: #{tpu_custom_call.1} parent=0
    _
  %s5 = ssub.s32 1, %s3
  %s6 = scalar_select 0, %s5, %s3
  $region1: #{tpu_custom_call.1} parent=0
    #allocation2 [shape = 'u8[8192]{0}', space=vmem, size = 0x2000, scoped, tag = 'input window, operand 0, single buffered']
    #allocation3 [shape = 's32[1]{0}', space=sflag, size = 0x4, scoped, tag = 'scoped memory for tpu_custom_call.1']
    #allocation4 [shape = 's32[1]{0}', space=sflag, size = 0x4, scoped, tag = 'scoped memory for tpu_custom_call.1']
    #allocation5 [shape = 'u8[8192]{0}', space=vmem, size = 0x2000, scoped, tag = 'input window, operand 1, single buffered']
    #allocation6 [shape = 's32[1]{0}', space=sflag, size = 0x4, scoped, tag = 'scoped memory for tpu_custom_call.1']
    #allocation7 [shape = 'u8[4096]{0}', space=vmem, size = 0x1000, scoped, tag = 'output window, operand 0, single buffered']
    %7 = vsyncpa [#allocation3], 0
    %8 = vsyncpa [#allocation6], 0
    %9 = vsyncpa [#allocation4], 0
    // Predicated region
    $region2: #{tpu_custom_call.1} parent=1 // pred_check
      _
    $region3: #{tpu_custom_call.1} parent=1 // pred_check_branch
      %11 = sbr.rel (0) target = $region5
    $region4: #{tpu_custom_call.1} parent=1 // pred_region
      %s12 = sadd.s32 0, 0
      %p13 = scmp.lt.s32.totalorder %s12, 0
      %s14 = scalar_select %p13, %s12, 0
      %s15 = smul.u32 2, %s14
      %s17 = ssub.s32 256, 256
      %18 = vsyncadd [#allocation3], %s17
      %s19 = smul.addr %s15, 128
      %s20 = scalar_lea.hbm %s0, %s19
      %s21 = sshll.u32 [#allocation2], 4
      %s22 = int_to_ptr.vmem [resolvable:$true] %s21
      %27 = dma.hbm_to_vmem [thread:$0]  %s20, 256, %s22, [#allocation3], 128, 128, 8
    $region5: #{tpu_custom_call.1} parent=1 // pred_fallthru
      _
    // Predicated region
    $region6: #{tpu_custom_call.1} parent=1 // pred_check
      _
    $region7: #{tpu_custom_call.1} parent=1 // pred_check_branch
      %29 = sbr.rel (0) target = $region9
    $region8: #{tpu_custom_call.1} parent=1 // pred_region
      %s30 = sadd.s32 0, 0
      %p31 = scmp.lt.s32.totalorder %s30, 0
      %s32 = scalar_select %p31, %s30, 0
      %s33 = smul.u32 2, %s32
      %s35 = ssub.s32 256, 256
      %36 = vsyncadd [#allocation6], %s35
      %s37 = smul.addr %s33, 128
      %s38 = scalar_lea.hbm %s1, %s37
      %s39 = sshll.u32 [#allocation5], 4
      %s40 = int_to_ptr.vmem [resolvable:$true] %s39
      %45 = dma.hbm_to_vmem [thread:$0]  %s38, 256, %s40, [#allocation6], 128, 128, 8
    $region9: #{tpu_custom_call.1} parent=1 // pred_fallthru
      _
    // Predicated region
    $region10: #{tpu_custom_call.1} parent=1 // pred_check
      _
    $region11: #{tpu_custom_call.1} parent=1 // pred_check_branch
      %47 = sbr.rel (0) target = $region13
    $region12: #{tpu_custom_call.1} parent=1 // pred_region
      %48 = dma.done [#allocation3], 256
    $region13: #{tpu_custom_call.1} parent=1 // pred_fallthru
      _
    // Predicated region
    $region14: #{tpu_custom_call.1} parent=1 // pred_check
      _
    $region15: #{tpu_custom_call.1} parent=1 // pred_check_branch
      %50 = sbr.rel (0) target = $region17
    $region16: #{tpu_custom_call.1} parent=1 // pred_region
      %51 = dma.done [#allocation6], 256
    $region17: #{tpu_custom_call.1} parent=1 // pred_fallthru
      _
    %s52 = sadd.s32 0, 0
    %p53 = scmp.lt.s32.totalorder %s52, 0
    %s54 = scalar_select %p53, %s52, 0
    %s55 = smul.u32 2, %s54
    %s56 = sadd.s32 0, 0
    %p57 = scmp.lt.s32.totalorder %s56, 0
    %s58 = scalar_select %p57, %s56, 0
    %s59 = smul.u32 2, %s58
    %p60 = scmp.eq.s32.totalorder 0, 0
    // Predicated region
    $region18: #{tpu_custom_call.1} parent=1 // pred_check
      %p61 = pneg %p60
    $region19: #{tpu_custom_call.1} parent=1 // pred_check_branch
      %63 = sbr.rel (%p61) target = $region21
    $region20: #{tpu_custom_call.1} parent=1 // pred_region
      %64 = vst [vmem:[#allocation7] sm:$0xff] 0.0
    $region21: #{tpu_custom_call.1} parent=1 // pred_fallthru
      _
    %s65 = sadd.s32 0, 0
    %s66 = smul.u32 %s65, 16
    %v67 = vlaneseq
    %v68 = vshrl.u32 %v67, 7
    %v69 = vadd.s32 %v68, 8
    %v70 = vstv %s66
    %v71 = vadd.s32 %v70, %v68
    %v72 = vadd.s32 %v70, %v69
    %vm73 = vcmp.lt.s32.totalorder %v71, 16
    %vm74 = vcmp.lt.s32.totalorder %v72, 16
    %v75 = vld [vmem:[#allocation2] sm:$0xff]
    %v76 = vld [vmem:[#allocation2 + $0x8] sm:$0xff]
    %v77 = vld [vmem:[#allocation5] sm:$0xff]
    %v78 = vld [vmem:[#allocation5 + $0x8] sm:$0xff]
    %v79 = vsub.f32 %v75, %v77
    %v80 = vsub.f32 %v76, %v78
    %v81 = vmul.f32 %v79, %v79
    %v82 = vmul.f32 %v80, %v80
    %v83 = vsel %vm73, %v81, 0.0
    %v84 = vsel %vm74, %v82, 0.0
    %v85 = vld [vmem:[#allocation7] sm:$0xff]
    %v86 = vadd.f32 %v83, %v84
    %v87 = vadd.f32 %v85, %v86
    %88 = vst [vmem:[#allocation7] sm:$0xff] %v87
    // Predicated region
    $region22: #{tpu_custom_call.1} parent=1 // pred_check
      _
    $region23: #{tpu_custom_call.1} parent=1 // pred_check_branch
      %90 = sbr.rel (0) target = $region25
    $region24: #{tpu_custom_call.1} parent=1 // pred_region
      %s92 = ssub.s32 128, 128
      %93 = vsyncadd [#allocation4], %s92
      %s95 = sshll.u32 [#allocation7], 4
      %s96 = int_to_ptr.vmem [resolvable:$true] %s95
      %98 = dma.vmem_to_hbm [thread:$0]  %s96, 128, %s2, [#allocation4]
    $region25: #{tpu_custom_call.1} parent=1 // pred_fallthru
      _
    // Predicated region
    $region26: #{tpu_custom_call.1} parent=1 // pred_check
      _
    $region27: #{tpu_custom_call.1} parent=1 // pred_check_branch
      %100 = sbr.rel (0) target = $region29
    $region28: #{tpu_custom_call.1} parent=1 // pred_region
      %101 = dma.done [#allocation4], 128
    $region29: #{tpu_custom_call.1} parent=1 // pred_fallthru
      _
    %102 = vsyncpa [#allocation3], 1
    %103 = vsyncpa [#allocation6], 1
    %104 = vsyncpa [#allocation4], 1

</llo_original>
